<compile_context>
chip_gen: v7x
topology: tpu7x:2x2x1
jax: 0.10.0
libtpu: 0.0.40
codegen_flags: <defaults>
</compile_context>

<pallas_src>
import jax
import jax.numpy as jnp
from jax.experimental import pallas as pl
from jax.experimental.pallas import tpu as pltpu


def _disc_kernel(x_ref, w1_ref, b1_ref, w2_ref, b2_ref, o_ref, acc_ref):
    # Grid: (n_k,) over the contraction dim ("arbitrary").
    #   x_ref  : (B, tk)  bf16       w1_ref: (tk, H) bf16
    #   b1_ref : (1, H)   f32        w2_ref: (1, H)  f32
    #   b2_ref : (1,)     f32 SMEM   o_ref : (B, 1)  f32
    #   acc_ref: (B, H)   f32 VMEM scratch (layer-1 accumulator)
    # NOTE: program_id / num_programs are read ONLY at top level (never inside
    # a pl.when body) -- nested use broke the previous version.
    k = pl.program_id(0)
    n_k = pl.num_programs(0)

    @pl.when(k == 0)
    def _init():
        acc_ref[...] = jnp.zeros_like(acc_ref)

    # Layer-1 partial product: bf16 operands on the MXU, f32 accumulation.
    acc_ref[...] += jnp.dot(
        x_ref[...], w1_ref[...], preferred_element_type=jnp.float32)

    @pl.when(k == n_k - 1)
    def _epilogue():
        h = acc_ref[...] + b1_ref[...]                 # (B, H) f32
        h = jnp.where(h >= 0.0, h, 0.2 * h)            # LeakyReLU(0.2) on VPU
        # Layer 2: the (512, 1) matmul degenerates to a VPU multiply + lane
        # reduction against w2 passed as a (1, H) row -- MXU stays free.
        z = jnp.sum(h * w2_ref[...], axis=-1, keepdims=True) + b2_ref[0]
        o_ref[...] = 1.0 / (1.0 + jnp.exp(-z))         # sigmoid, in-kernel


def _choose_tk(d_in, max_tk):
    """Return (tk, padded_d_in).

    Whole contraction in one block when it fits; else the largest
    multiple-of-256 divisor of d_in <= max_tk; else clamp tk to max_tk
    (rounded to a 256 multiple) and zero-pad K to a tk multiple.
    """
    if d_in <= max_tk:
        return d_in, d_in
    best = None
    t = 256
    while t <= max_tk:
        if d_in % t == 0:
            best = t
        t += 256
    if best is not None:
        return best, d_in
    tk = max(256, (max_tk // 256) * 256)
    n_k = -(-d_in // tk)
    return tk, n_k * tk


def disc_forward(x_nchw, w1, b1, w2, b2, *, max_tk=8192):
    """Disc(sep, size) forward.  x_nchw: (B, 512-sep, size, size) -> (B,) f32."""
    B = x_nchw.shape[0]
    d_in = x_nchw.shape[1] * x_nchw.shape[2] * x_nchw.shape[3]
    hidden = w1.shape[1]

    # Same flattening as torch .view; stream MXU operands as bf16.
    x = x_nchw.reshape(B, d_in).astype(jnp.bfloat16)
    # w1 should already be stored as bf16 (cast once at init, outside the hot
    # path); this astype is a no-op in that case.
    w1b = w1 if w1.dtype == jnp.bfloat16 else w1.astype(jnp.bfloat16)
    b1r = b1.reshape(1, hidden).astype(jnp.float32)
    w2r = w2.reshape(1, hidden).astype(jnp.float32)    # (512, 1) column -> row
    b2r = jnp.reshape(b2, (1,)).astype(jnp.float32)

    tk, d_pad = _choose_tk(d_in, max_tk)
    if d_pad != d_in:
        # Zero-pad the contraction dim so every K block is full (zeros add 0).
        x = jnp.pad(x, ((0, 0), (0, d_pad - d_in)))
        w1b = jnp.pad(w1b, ((0, d_pad - d_in), (0, 0)))
    n_k = d_pad // tk

    out = pl.pallas_call(
        _disc_kernel,
        out_shape=jax.ShapeDtypeStruct((B, 1), jnp.float32),
        grid=(n_k,),
        in_specs=[
            pl.BlockSpec((B, tk), lambda k: (0, k)),        # x K tiles
            pl.BlockSpec((tk, hidden), lambda k: (k, 0)),   # w1 full-width tiles
            pl.BlockSpec((1, hidden), lambda k: (0, 0)),    # b1 row
            pl.BlockSpec((1, hidden), lambda k: (0, 0)),    # w2 row
            pl.BlockSpec(memory_space=pltpu.MemorySpace.SMEM),  # b2 scalar
        ],
        out_specs=pl.BlockSpec((B, 1), lambda k: (0, 0)),
        scratch_shapes=[pltpu.VMEM((B, hidden), jnp.float32)],
        compiler_params=pltpu.CompilerParams(
            dimension_semantics=("arbitrary",),
            # tk=8192 -> ~16.3 MiB double-buffered working set; 48 MiB keeps
            # headroom on v7x (64 MiB physical) and is trivial on v5e/v6e.
            vmem_limit_bytes=48 * 1024 * 1024,
        ),
    )(x, w1b, b1r, w2r, b2r)

    # Sigmoid + b2 already applied in-kernel; just flatten like .view(-1).
    return out[:, 0]


if __name__ == "__main__":
    # Small config: sep = 480, size = 4  ->  D_in = (512 - 480) * 4 * 4 = 512
    sep, size = 480, 4
    C = 512 - sep
    B = 8
    d_in = C * size * size
    hidden = 512

    key = jax.random.PRNGKey(0)
    kx, k1, k2, k3, k4 = jax.random.split(key, 5)
    # Init mimicking torch.nn.Linear (uniform +/- 1/sqrt(fan_in)).
    lim1 = 1.0 / jnp.sqrt(jnp.float32(d_in))
    lim2 = 1.0 / jnp.sqrt(jnp.float32(hidden))
    x = jax.random.normal(kx, (B, C, size, size), jnp.float32)
    w1 = jax.random.uniform(k1, (d_in, hidden), jnp.float32, -lim1, lim1)
    b1 = jax.random.uniform(k2, (hidden,), jnp.float32, -lim1, lim1)
    w2 = jax.random.uniform(k3, (hidden, 1), jnp.float32, -lim2, lim2)
    b2 = jax.random.uniform(k4, (1,), jnp.float32, -lim2, lim2)

    # Cast the dominant HBM stream once, outside the per-call hot path.
    w1_bf16 = w1.astype(jnp.bfloat16)

    # Plain-JAX reference using the same bf16-rounded matmul inputs the kernel
    # streams (f32 accumulation on both sides).
    xq = x.reshape(B, d_in).astype(jnp.bfloat16).astype(jnp.float32)
    w1q = w1_bf16.astype(jnp.float32)
    h = jnp.dot(xq, w1q, precision=jax.lax.Precision.HIGHEST) + b1
    h = jnp.where(h >= 0.0, h, 0.2 * h)
    z = jnp.dot(h, w2, precision=jax.lax.Precision.HIGHEST)[:, 0] + b2[0]
    ref = jax.nn.sigmoid(z)

    # Exercise both the single-K-block path (tk == D_in) and the pipelined
    # multi-K-step accumulator path (tk = 256 -> 2 K tiles).
    for max_tk in (8192, 256):
        y = disc_forward(x, w1_bf16, b1, w2, b2, max_tk=max_tk)
        jax.block_until_ready(y)
        assert y.shape == (B,), y.shape
        err = jnp.max(jnp.abs(y - ref))
        assert jnp.allclose(y, ref, atol=2e-3, rtol=2e-3), (
            f"max_tk={max_tk}: max abs err {err}")

    print("KERNEL_OK")
</pallas_src>

<mosaic_0001>
module attributes {stable_mosaic.version = 11 : i64} {
  func.func @_disc_kernel(%arg0: i32, %arg1: memref<8x512xbf16, #tpu.memory_space<vmem>>, %arg2: memref<512x512xbf16, #tpu.memory_space<vmem>>, %arg3: memref<1x512xf32, #tpu.memory_space<vmem>>, %arg4: memref<1x512xf32, #tpu.memory_space<vmem>>, %arg5: memref<1xf32, #tpu.memory_space<smem>>, %arg6: memref<8x1xf32, #tpu.memory_space<vmem>>, %arg7: memref<8x512xf32, #tpu.memory_space<vmem>>) attributes {dimension_semantics = [#tpu.dimension_semantics<arbitrary>], iteration_bounds = array<i64: 1>, scalar_prefetch = 0 : i64, scratch_operands = 1 : i64, tpu.core_type = #tpu.core_type<tc>, window_params = [{transform_indices = @transform_0, window_bounds = array<i64: 8, 512>}, {transform_indices = @transform_1, window_bounds = array<i64: 512, 512>}, {pipeline_mode = #tpu.pipeline_mode<synchronous>, transform_indices = @transform_2, window_bounds = array<i64: 1, 512>}, {pipeline_mode = #tpu.pipeline_mode<synchronous>, transform_indices = @transform_3, window_bounds = array<i64: 1, 512>}, {transform_indices = @transform_4, window_bounds = array<i64: 1>}, {pipeline_mode = #tpu.pipeline_mode<synchronous>, transform_indices = @transform_5, window_bounds = array<i64: 8, 1>}]} {
    %c0_i32 = arith.constant 0 : i32
    %0 = arith.cmpi eq, %arg0, %c0_i32 : i32
    %1 = arith.extui %0 : i1 to i32
    %c0_i32_0 = arith.constant 0 : i32
    %2 = arith.cmpi ne, %1, %c0_i32_0 : i32
    scf.if %2 {
      %cst_10 = arith.constant 0.000000e+00 : f32
      %12 = vector.broadcast %cst_10 : f32 to vector<8x512xf32>
      %c0_11 = arith.constant 0 : index
      %c0_12 = arith.constant 0 : index
      %13 = vector.load %arg7[%c0_11, %c0_12] : memref<8x512xf32, #tpu.memory_space<vmem>>, vector<8x512xf32>
      tpu.vector_store %arg7[%c0_11, %c0_12], %12 {strides = array<i32>} : memref<8x512xf32, #tpu.memory_space<vmem>>, vector<8x512xf32>,
    } else {
    }
    %c0 = arith.constant 0 : index
    %c0_1 = arith.constant 0 : index
    %3 = vector.load %arg7[%c0, %c0_1] : memref<8x512xf32, #tpu.memory_space<vmem>>, vector<8x512xf32>
    %c0_2 = arith.constant 0 : index
    %c0_3 = arith.constant 0 : index
    %4 = vector.load %arg1[%c0_2, %c0_3] : memref<8x512xbf16, #tpu.memory_space<vmem>>, vector<8x512xbf16>
    %c0_4 = arith.constant 0 : index
    %c0_5 = arith.constant 0 : index
    %5 = vector.load %arg2[%c0_4, %c0_5] : memref<512x512xbf16, #tpu.memory_space<vmem>>, vector<512x512xbf16>
    %cst = arith.constant dense<0.000000e+00> : vector<8x512xf32>
    %6 = tpu.matmul %4, %5, %cst {dimension_numbers = #tpu.dot_dimension_numbers<[1], [0], [0], [1], [0, 0, 1, 1], [], []>} : vector<8x512xbf16>, vector<512x512xbf16>, vector<8x512xf32> -> vector<8x512xf32>
    %7 = arith.addf %3, %6 : vector<8x512xf32>
    %c0_6 = arith.constant 0 : index
    %c0_7 = arith.constant 0 : index
    %8 = vector.load %arg7[%c0_6, %c0_7] : memref<8x512xf32, #tpu.memory_space<vmem>>, vector<8x512xf32>
    tpu.vector_store %arg7[%c0_6, %c0_7], %7 {strides = array<i32>} : memref<8x512xf32, #tpu.memory_space<vmem>>, vector<8x512xf32>,
    %c0_i32_8 = arith.constant 0 : i32
    %9 = arith.cmpi eq, %arg0, %c0_i32_8 : i32
    %10 = arith.extui %9 : i1 to i32
    %c0_i32_9 = arith.constant 0 : i32
    %11 = arith.cmpi ne, %10, %c0_i32_9 : i32
    scf.if %11 {
      %c0_10 = arith.constant 0 : index
      %c0_11 = arith.constant 0 : index
      %12 = vector.load %arg7[%c0_10, %c0_11] : memref<8x512xf32, #tpu.memory_space<vmem>>, vector<8x512xf32>
      %c0_12 = arith.constant 0 : index
      %c0_13 = arith.constant 0 : index
      %13 = vector.load %arg3[%c0_12, %c0_13] : memref<1x512xf32, #tpu.memory_space<vmem>>, vector<1x512xf32>
      %14 = vector.broadcast %13 : vector<1x512xf32> to vector<8x512xf32>
      %15 = arith.addf %12, %14 : vector<8x512xf32>
      %cst_14 = arith.constant 0.000000e+00 : f32
      %16 = vector.broadcast %cst_14 : f32 to vector<8x512xf32>
      %17 = arith.cmpf oge, %15, %16 : vector<8x512xf32>
      %cst_15 = arith.constant 2.000000e-01 : f32
      %18 = vector.broadcast %cst_15 : f32 to vector<8x512xf32>
      %19 = arith.mulf %18, %15 : vector<8x512xf32>
      %20 = arith.select %17, %15, %19 : vector<8x512xi1>, vector<8x512xf32>
      %c0_16 = arith.constant 0 : index
      %c0_17 = arith.constant 0 : index
      %21 = vector.load %arg4[%c0_16, %c0_17] : memref<1x512xf32, #tpu.memory_space<vmem>>, vector<1x512xf32>
      %22 = vector.broadcast %21 : vector<1x512xf32> to vector<8x512xf32>
      %23 = arith.mulf %20, %22 : vector<8x512xf32>
      %cst_18 = arith.constant dense<0.000000e+00> : vector<8xf32>
      %24 = vector.multi_reduction <add>, %23, %cst_18 [1] : vector<8x512xf32> to vector<8xf32>
      %25 = vector.shape_cast %24 : vector<8xf32> to vector<8x1xf32>
      %c0_19 = arith.constant 0 : index
      %26 = memref.load %arg5[%c0_19] : memref<1xf32, #tpu.memory_space<smem>>
      %27 = vector.broadcast %26 : f32 to vector<8x1xf32>
      %28 = arith.addf %25, %27 : vector<8x1xf32>
      %cst_20 = arith.constant 0.000000e+00 : f32
      %29 = vector.broadcast %cst_20 : f32 to vector<8x1xf32>
      %30 = arith.subf %29, %28 : vector<8x1xf32>
      %31 = math.exp %30 : vector<8x1xf32>
      %cst_21 = arith.constant 1.000000e+00 : f32
      %32 = vector.broadcast %cst_21 : f32 to vector<8x1xf32>
      %33 = arith.addf %32, %31 : vector<8x1xf32>
      %cst_22 = arith.constant 1.000000e+00 : f32
      %34 = vector.broadcast %cst_22 : f32 to vector<8x1xf32>
      %35 = arith.divf %34, %33 : vector<8x1xf32>
      %c0_23 = arith.constant 0 : index
      %c0_24 = arith.constant 0 : index
      %36 = vector.load %arg6[%c0_23, %c0_24] : memref<8x1xf32, #tpu.memory_space<vmem>>, vector<8x1xf32>
      tpu.vector_store %arg6[%c0_23, %c0_24], %35 {strides = array<i32>} : memref<8x1xf32, #tpu.memory_space<vmem>>, vector<8x1xf32>,
    } else {
    }
    return
  }
  func.func @transform_0(%arg0: i32) -> (i32, i32) {
    %c0_i32 = arith.constant 0 : i32
    %c0_i32_0 = arith.constant 0 : i32
    return %c0_i32, %arg0 : i32, i32
  }
  func.func @transform_1(%arg0: i32) -> (i32, i32) {
    %c0_i32 = arith.constant 0 : i32
    %c0_i32_0 = arith.constant 0 : i32
    return %arg0, %c0_i32 : i32, i32
  }
  func.func @transform_2(%arg0: i32) -> (i32, i32) {
    %c0_i32 = arith.constant 0 : i32
    %c0_i32_0 = arith.constant 0 : i32
    %c0_i32_1 = arith.constant 0 : i32
    return %c0_i32, %c0_i32_0 : i32, i32
  }
  func.func @transform_3(%arg0: i32) -> (i32, i32) {
    %c0_i32 = arith.constant 0 : i32
    %c0_i32_0 = arith.constant 0 : i32
    %c0_i32_1 = arith.constant 0 : i32
    return %c0_i32, %c0_i32_0 : i32, i32
  }
  func.func @transform_4(%arg0: i32) -> i32 {
    %c0_i32 = arith.constant 0 : i32
    %c0_i32_0 = arith.constant 0 : i32
    return %c0_i32 : i32
  }
  func.func @transform_5(%arg0: i32) -> (i32, i32) {
    %c0_i32 = arith.constant 0 : i32
    %c0_i32_0 = arith.constant 0 : i32
    %c0_i32_1 = arith.constant 0 : i32
    return %c0_i32, %c0_i32_0 : i32, i32
  }
}

</mosaic_0001>

<llo_original>
// kernel: tpu_custom_call.1
$region0: #{tpu_custom_call.1}
  #allocation0 [shape = 'u32[]', space=smem, size = 0x4, offset = 0x4, fixed_abs, tag = 'smem constant byte address 0x4 - core index']
  #allocation1 [shape = 'u32[144,128]{1,0:T(1,128)}', space=vmem, size = 0x12000, scoped, tag = 'internal scratch']
  #allocation2 [shape = 'f32[8,512]{1,0:T(8,128)}', space=vmem, size = 0x4000, scoped, tag = 'scratch operand']
  #allocation3 [shape = 'f32[1]{0:T(128)S(6)}', space=smem, size = 0x200, scoped, tag = 'scoped memory for tpu_custom_call.1']
  %s0 = inlined_call_operand.hbm [shape: bf16[8,512], index: 0, kind: input, shape index: {}]
  %s1 = inlined_call_operand.hbm [shape: bf16[512,512], index: 1, kind: input, shape index: {}]
  %s2 = inlined_call_operand.vmem [shape: f32[1,512], index: 2, kind: input, shape index: {}]
  %s3 = inlined_call_operand.vmem [shape: f32[1,512], index: 3, kind: input, shape index: {}]
  %s4 = inlined_call_operand.<no memory space> [shape: f32[1], index: 4, kind: input, shape index: {}]
  %s5 = inlined_call_operand.vmem [shape: f32[8,1], index: 5, kind: output, shape index: {}]
  %s6 = sld [smem:[#allocation0]]
  $region46: #{tpu_custom_call.1} parent=0
    _
  %s8 = ssub.s32 1, %s6
  %s9 = scalar_select 0, %s8, %s6
  %10 = sst [smem:[#allocation3]] %s4
  $region1: #{tpu_custom_call.1} parent=0
    #allocation4 [shape = 'u8[8192]{0}', space=vmem, size = 0x2000, scoped, tag = 'input window, operand 0, single buffered']
    #allocation5 [shape = 's32[1]{0}', space=sflag, size = 0x4, scoped, tag = 'scoped memory for tpu_custom_call.1']
    #allocation6 [shape = 'u8[524288]{0}', space=vmem, size = 0x80000, scoped, tag = 'input window, operand 1, single buffered']
    #allocation7 [shape = 's32[1]{0}', space=sflag, size = 0x4, scoped, tag = 'scoped memory for tpu_custom_call.1']
    %11 = vsyncpa [#allocation5], 0
    %12 = vsyncpa [#allocation7], 0
    // Predicated region
    $region2: #{tpu_custom_call.1} parent=1 // pred_check
      _
    $region3: #{tpu_custom_call.1} parent=1 // pred_check_branch
      %14 = sbr.rel (0) target = $region5
    $region4: #{tpu_custom_call.1} parent=1 // pred_region
      %s16 = ssub.s32 256, 256
      %17 = vsyncadd [#allocation5], %s16
      %s19 = sshll.u32 [#allocation4], 4
      %s20 = int_to_ptr.vmem [resolvable:$true] %s19
      %22 = dma.hbm_to_vmem [thread:$0]  %s0, 256, %s20, [#allocation5]
    $region5: #{tpu_custom_call.1} parent=1 // pred_fallthru
      _
    // Predicated region
    $region6: #{tpu_custom_call.1} parent=1 // pred_check
      _
    $region7: #{tpu_custom_call.1} parent=1 // pred_check_branch
      %24 = sbr.rel (0) target = $region9
    $region8: #{tpu_custom_call.1} parent=1 // pred_region
      %s26 = ssub.s32 16384, 16384
      %27 = vsyncadd [#allocation7], %s26
      %s28 = sshll.u32 [#allocation6], 4
      %s29 = int_to_ptr.vmem [resolvable:$true] %s28
      %34 = dma.hbm_to_vmem [thread:$0]  %s1, 16384, %s29, [#allocation7], 256, 256, 16
    $region9: #{tpu_custom_call.1} parent=1 // pred_fallthru
      _
    // Predicated region
    $region10: #{tpu_custom_call.1} parent=1 // pred_check
      _
    $region11: #{tpu_custom_call.1} parent=1 // pred_check_branch
      %36 = sbr.rel (0) target = $region13
    $region12: #{tpu_custom_call.1} parent=1 // pred_region
      _
    $region13: #{tpu_custom_call.1} parent=1 // pred_fallthru
      _
    // Predicated region
    $region14: #{tpu_custom_call.1} parent=1 // pred_check
      _
    $region15: #{tpu_custom_call.1} parent=1 // pred_check_branch
      %38 = sbr.rel (0) target = $region17
    $region16: #{tpu_custom_call.1} parent=1 // pred_region
      _
    $region17: #{tpu_custom_call.1} parent=1 // pred_fallthru
      _
    // Predicated region
    $region18: #{tpu_custom_call.1} parent=1 // pred_check
      _
    $region19: #{tpu_custom_call.1} parent=1 // pred_check_branch
      %40 = sbr.rel (0) target = $region21
    $region20: #{tpu_custom_call.1} parent=1 // pred_region
      _
    $region21: #{tpu_custom_call.1} parent=1 // pred_fallthru
      _
    // Predicated region
    $region22: #{tpu_custom_call.1} parent=1 // pred_check
      _
    $region23: #{tpu_custom_call.1} parent=1 // pred_check_branch
      %42 = sbr.rel (0) target = $region25
    $region24: #{tpu_custom_call.1} parent=1 // pred_region
      %43 = dma.done [#allocation5], 256
    $region25: #{tpu_custom_call.1} parent=1 // pred_fallthru
      _
    // Predicated region
    $region26: #{tpu_custom_call.1} parent=1 // pred_check
      _
    $region27: #{tpu_custom_call.1} parent=1 // pred_check_branch
      %45 = sbr.rel (0) target = $region29
    $region28: #{tpu_custom_call.1} parent=1 // pred_region
      %46 = dma.done [#allocation7], 16384
    $region29: #{tpu_custom_call.1} parent=1 // pred_fallthru
      _
    %p47 = scmp.eq.s32.totalorder 0, 0
    // Predicated region
    $region30: #{tpu_custom_call.1} parent=1 // pred_check
      %p48 = pneg %p47
    $region31: #{tpu_custom_call.1} parent=1 // pred_check_branch
      %50 = sbr.rel (%p48) target = $region33
    $region32: #{tpu_custom_call.1} parent=1 // pred_region
      %51 = vst [vmem:[#allocation2] sm:$0xff] 0.0
      %52 = vst [vmem:[#allocation2 + $0x8] sm:$0xff] 0.0
      %53 = vst [vmem:[#allocation2 + $0x10] sm:$0xff] 0.0
      %54 = vst [vmem:[#allocation2 + $0x18] sm:$0xff] 0.0
    $region33: #{tpu_custom_call.1} parent=1 // pred_fallthru
      _
    %v55 = vld [vmem:[#allocation2] sm:$0xff]
    %v56 = vld [vmem:[#allocation2 + $0x8] sm:$0xff]
    %v57 = vld [vmem:[#allocation2 + $0x10] sm:$0xff]
    %v58 = vld [vmem:[#allocation2 + $0x18] sm:$0xff]
    %v59 = vld [vmem:[#allocation4] sm:$0xff]
    %v60 = vld [vmem:[#allocation4 + $0x8] sm:$0xff]
    %v61 = vld [vmem:[#allocation6] sm:$0xff]
    %v62 = vld [vmem:[#allocation6 + $0x8] sm:$0xff]
    %v63 = vld [vmem:[#allocation6 + $0x10] sm:$0xff]
    %v64 = vld [vmem:[#allocation6 + $0x18] sm:$0xff]
    %v65 = vld [vmem:[#allocation6 + $0x20] sm:$0xff]
    %v66 = vld [vmem:[#allocation6 + $0x28] sm:$0xff]
    %v67 = vld [vmem:[#allocation6 + $0x30] sm:$0xff]
    %v68 = vld [vmem:[#allocation6 + $0x38] sm:$0xff]
    %v69 = vld [vmem:[#allocation6 + $0x40] sm:$0xff]
    %v70 = vld [vmem:[#allocation6 + $0x48] sm:$0xff]
    %v71 = vld [vmem:[#allocation6 + $0x50] sm:$0xff]
    %v72 = vld [vmem:[#allocation6 + $0x58] sm:$0xff]
    %v73 = vld [vmem:[#allocation6 + $0x60] sm:$0xff]
    %v74 = vld [vmem:[#allocation6 + $0x68] sm:$0xff]
    %v75 = vld [vmem:[#allocation6 + $0x70] sm:$0xff]
    %v76 = vld [vmem:[#allocation6 + $0x78] sm:$0xff]
    %v77 = vld [vmem:[#allocation6 + $0x80] sm:$0xff]
    %v78 = vld [vmem:[#allocation6 + $0x88] sm:$0xff]
    %v79 = vld [vmem:[#allocation6 + $0x90] sm:$0xff]
    %v80 = vld [vmem:[#allocation6 + $0x98] sm:$0xff]
    %v81 = vld [vmem:[#allocation6 + $0xa0] sm:$0xff]
    %v82 = vld [vmem:[#allocation6 + $0xa8] sm:$0xff]
    %v83 = vld [vmem:[#allocation6 + $0xb0] sm:$0xff]
    %v84 = vld [vmem:[#allocation6 + $0xb8] sm:$0xff]
    %v85 = vld [vmem:[#allocation6 + $0xc0] sm:$0xff]
    %v86 = vld [vmem:[#allocation6 + $0xc8] sm:$0xff]
    %v87 = vld [vmem:[#allocation6 + $0xd0] sm:$0xff]
    %v88 = vld [vmem:[#allocation6 + $0xd8] sm:$0xff]
    %v89 = vld [vmem:[#allocation6 + $0xe0] sm:$0xff]
    %v90 = vld [vmem:[#allocation6 + $0xe8] sm:$0xff]
    %v91 = vld [vmem:[#allocation6 + $0xf0] sm:$0xff]
    %v92 = vld [vmem:[#allocation6 + $0xf8] sm:$0xff]
    %v93 = vld [vmem:[#allocation6 + $0x100] sm:$0xff]
    %v94 = vld [vmem:[#allocation6 + $0x108] sm:$0xff]
    %v95 = vld [vmem:[#allocation6 + $0x110] sm:$0xff]
    %v96 = vld [vmem:[#allocation6 + $0x118] sm:$0xff]
    %v97 = vld [vmem:[#allocation6 + $0x120] sm:$0xff]
    %v98 = vld [vmem:[#allocation6 + $0x128] sm:$0xff]
    %v99 = vld [vmem:[#allocation6 + $0x130] sm:$0xff]
    %v100 = vld [vmem:[#allocation6 + $0x138] sm:$0xff]
    %v101 = vld [vmem:[#allocation6 + $0x140] sm:$0xff]
    %v102 = vld [vmem:[#allocation6 + $0x148] sm:$0xff]
    %v103 = vld [vmem:[#allocation6 + $0x150] sm:$0xff]
    %v104 = vld [vmem:[#allocation6 + $0x158] sm:$0xff]
    %v105 = vld [vmem:[#allocation6 + $0x160] sm:$0xff]
    %v106 = vld [vmem:[#allocation6 + $0x168] sm:$0xff]
    %v107 = vld [vmem:[#allocation6 + $0x170] sm:$0xff]
    %v108 = vld [vmem:[#allocation6 + $0x178] sm:$0xff]
    %v109 = vld [vmem:[#allocation6 + $0x180] sm:$0xff]
    %v110 = vld [vmem:[#allocation6 + $0x188] sm:$0xff]
    %v111 = vld [vmem:[#allocation6 + $0x190] sm:$0xff]
    %v112 = vld [vmem:[#allocation6 + $0x198] sm:$0xff]
    %v113 = vld [vmem:[#allocation6 + $0x1a0] sm:$0xff]
    %v114 = vld [vmem:[#allocation6 + $0x1a8] sm:$0xff]
    %v115 = vld [vmem:[#allocation6 + $0x1b0] sm:$0xff]
    %v116 = vld [vmem:[#allocation6 + $0x1b8] sm:$0xff]
    %v117 = vld [vmem:[#allocation6 + $0x1c0] sm:$0xff]
    %v118 = vld [vmem:[#allocation6 + $0x1c8] sm:$0xff]
    %v119 = vld [vmem:[#allocation6 + $0x1d0] sm:$0xff]
    %v120 = vld [vmem:[#allocation6 + $0x1d8] sm:$0xff]
    %v121 = vld [vmem:[#allocation6 + $0x1e0] sm:$0xff]
    %v122 = vld [vmem:[#allocation6 + $0x1e8] sm:$0xff]
    %v123 = vld [vmem:[#allocation6 + $0x1f0] sm:$0xff]
    %v124 = vld [vmem:[#allocation6 + $0x1f8] sm:$0xff]
    %v125 = vld [vmem:[#allocation6 + $0x200] sm:$0xff]
    %v126 = vld [vmem:[#allocation6 + $0x208] sm:$0xff]
    %v127 = vld [vmem:[#allocation6 + $0x210] sm:$0xff]
    %v128 = vld [vmem:[#allocation6 + $0x218] sm:$0xff]
    %v129 = vld [vmem:[#allocation6 + $0x220] sm:$0xff]
    %v130 = vld [vmem:[#allocation6 + $0x228] sm:$0xff]
    %v131 = vld [vmem:[#allocation6 + $0x230] sm:$0xff]
    %v132 = vld [vmem:[#allocation6 + $0x238] sm:$0xff]
    %v133 = vld [vmem:[#allocation6 + $0x240] sm:$0xff]
    %v134 = vld [vmem:[#allocation6 + $0x248] sm:$0xff]
    %v135 = vld [vmem:[#allocation6 + $0x250] sm:$0xff]
    %v136 = vld [vmem:[#allocation6 + $0x258] sm:$0xff]
    %v137 = vld [vmem:[#allocation6 + $0x260] sm:$0xff]
    %v138 = vld [vmem:[#allocation6 + $0x268] sm:$0xff]
    %v139 = vld [vmem:[#allocation6 + $0x270] sm:$0xff]
    %v140 = vld [vmem:[#allocation6 + $0x278] sm:$0xff]
    %v141 = vld [vmem:[#allocation6 + $0x280] sm:$0xff]
    %v142 = vld [vmem:[#allocation6 + $0x288] sm:$0xff]
    %v143 = vld [vmem:[#allocation6 + $0x290] sm:$0xff]
    %v144 = vld [vmem:[#allocation6 + $0x298] sm:$0xff]
    %v145 = vld [vmem:[#allocation6 + $0x2a0] sm:$0xff]
    %v146 = vld [vmem:[#allocation6 + $0x2a8] sm:$0xff]
    %v147 = vld [vmem:[#allocation6 + $0x2b0] sm:$0xff]
    %v148 = vld [vmem:[#allocation6 + $0x2b8] sm:$0xff]
    %v149 = vld [vmem:[#allocation6 + $0x2c0] sm:$0xff]
    %v150 = vld [vmem:[#allocation6 + $0x2c8] sm:$0xff]
    %v151 = vld [vmem:[#allocation6 + $0x2d0] sm:$0xff]
    %v152 = vld [vmem:[#allocation6 + $0x2d8] sm:$0xff]
    %v153 = vld [vmem:[#allocation6 + $0x2e0] sm:$0xff]
    %v154 = vld [vmem:[#allocation6 + $0x2e8] sm:$0xff]
    %v155 = vld [vmem:[#allocation6 + $0x2f0] sm:$0xff]
    %v156 = vld [vmem:[#allocation6 + $0x2f8] sm:$0xff]
    %v157 = vld [vmem:[#allocation6 + $0x300] sm:$0xff]
    %v158 = vld [vmem:[#allocation6 + $0x308] sm:$0xff]
    %v159 = vld [vmem:[#allocation6 + $0x310] sm:$0xff]
    %v160 = vld [vmem:[#allocation6 + $0x318] sm:$0xff]
    %v161 = vld [vmem:[#allocation6 + $0x320] sm:$0xff]
    %v162 = vld [vmem:[#allocation6 + $0x328] sm:$0xff]
    %v163 = vld [vmem:[#allocation6 + $0x330] sm:$0xff]
    %v164 = vld [vmem:[#allocation6 + $0x338] sm:$0xff]
    %v165 = vld [vmem:[#allocation6 + $0x340] sm:$0xff]
    %v166 = vld [vmem:[#allocation6 + $0x348] sm:$0xff]
    %v167 = vld [vmem:[#allocation6 + $0x350] sm:$0xff]
    %v168 = vld [vmem:[#allocation6 + $0x358] sm:$0xff]
    %v169 = vld [vmem:[#allocation6 + $0x360] sm:$0xff]
    %v170 = vld [vmem:[#allocation6 + $0x368] sm:$0xff]
    %v171 = vld [vmem:[#allocation6 + $0x370] sm:$0xff]
    %v172 = vld [vmem:[#allocation6 + $0x378] sm:$0xff]
    %v173 = vld [vmem:[#allocation6 + $0x380] sm:$0xff]
    %v174 = vld [vmem:[#allocation6 + $0x388] sm:$0xff]
    %v175 = vld [vmem:[#allocation6 + $0x390] sm:$0xff]
    %v176 = vld [vmem:[#allocation6 + $0x398] sm:$0xff]
    %v177 = vld [vmem:[#allocation6 + $0x3a0] sm:$0xff]
    %v178 = vld [vmem:[#allocation6 + $0x3a8] sm:$0xff]
    %v179 = vld [vmem:[#allocation6 + $0x3b0] sm:$0xff]
    %v180 = vld [vmem:[#allocation6 + $0x3b8] sm:$0xff]
    %v181 = vld [vmem:[#allocation6 + $0x3c0] sm:$0xff]
    %v182 = vld [vmem:[#allocation6 + $0x3c8] sm:$0xff]
    %v183 = vld [vmem:[#allocation6 + $0x3d0] sm:$0xff]
    %v184 = vld [vmem:[#allocation6 + $0x3d8] sm:$0xff]
    %v185 = vld [vmem:[#allocation6 + $0x3e0] sm:$0xff]
    %v186 = vld [vmem:[#allocation6 + $0x3e8] sm:$0xff]
    %v187 = vld [vmem:[#allocation6 + $0x3f0] sm:$0xff]
    %v188 = vld [vmem:[#allocation6 + $0x3f8] sm:$0xff]
    %v191 = vunpack.c.l.b16 %v59
    %v192 = vunpack.c.h.b16 %v59
    %v193 = vunpack.c.l.b16 %v60
    %v194 = vunpack.c.h.b16 %v60
    %v195 = vpack.c.b16 %v191, %v191
    %v196 = vpack.c.b16 %v192, %v192
    %v197 = vpack.c.b16 %v193, %v193
    %v198 = vpack.c.b16 %v194, %v194
    %v331 = vunpack.c.l.b16 %v61
    %v332 = vunpack.c.h.b16 %v61
    %v333 = vunpack.c.l.b16 %v62
    %v334 = vunpack.c.h.b16 %v62
    %v335 = vunpack.c.l.b16 %v63
    %v336 = vunpack.c.h.b16 %v63
    %v337 = vunpack.c.l.b16 %v64
    %v338 = vunpack.c.h.b16 %v64
    %v339 = vunpack.c.l.b16 %v65
    %v340 = vunpack.c.h.b16 %v65
    %v341 = vunpack.c.l.b16 %v66
    %v342 = vunpack.c.h.b16 %v66
    %v343 = vunpack.c.l.b16 %v67
    %v344 = vunpack.c.h.b16 %v67
    %v345 = vunpack.c.l.b16 %v68
    %v346 = vunpack.c.h.b16 %v68
    %v347 = vunpack.c.l.b16 %v69
    %v348 = vunpack.c.h.b16 %v69
    %v349 = vunpack.c.l.b16 %v70
    %v350 = vunpack.c.h.b16 %v70
    %v351 = vunpack.c.l.b16 %v71
    %v352 = vunpack.c.h.b16 %v71
    %v353 = vunpack.c.l.b16 %v72
    %v354 = vunpack.c.h.b16 %v72
    %v355 = vunpack.c.l.b16 %v73
    %v356 = vunpack.c.h.b16 %v73
    %v357 = vunpack.c.l.b16 %v74
    %v358 = vunpack.c.h.b16 %v74
    %v359 = vunpack.c.l.b16 %v75
    %v360 = vunpack.c.h.b16 %v75
    %v361 = vunpack.c.l.b16 %v76
    %v362 = vunpack.c.h.b16 %v76
    %v363 = vunpack.c.l.b16 %v77
    %v364 = vunpack.c.h.b16 %v77
    %v365 = vunpack.c.l.b16 %v78
    %v366 = vunpack.c.h.b16 %v78
    %v367 = vunpack.c.l.b16 %v79
    %v368 = vunpack.c.h.b16 %v79
    %v369 = vunpack.c.l.b16 %v80
    %v370 = vunpack.c.h.b16 %v80
    %v371 = vunpack.c.l.b16 %v81
    %v372 = vunpack.c.h.b16 %v81
    %v373 = vunpack.c.l.b16 %v82
    %v374 = vunpack.c.h.b16 %v82
    %v375 = vunpack.c.l.b16 %v83
    %v376 = vunpack.c.h.b16 %v83
    %v377 = vunpack.c.l.b16 %v84
    %v378 = vunpack.c.h.b16 %v84
    %v379 = vunpack.c.l.b16 %v85
    %v380 = vunpack.c.h.b16 %v85
    %v381 = vunpack.c.l.b16 %v86
    %v382 = vunpack.c.h.b16 %v86
    %v383 = vunpack.c.l.b16 %v87
    %v384 = vunpack.c.h.b16 %v87
    %v385 = vunpack.c.l.b16 %v88
    %v386 = vunpack.c.h.b16 %v88
    %v387 = vunpack.c.l.b16 %v89
    %v388 = vunpack.c.h.b16 %v89
    %v389 = vunpack.c.l.b16 %v90
    %v390 = vunpack.c.h.b16 %v90
    %v391 = vunpack.c.l.b16 %v91
    %v392 = vunpack.c.h.b16 %v91
    %v393 = vunpack.c.l.b16 %v92
    %v394 = vunpack.c.h.b16 %v92
    %v395 = vunpack.c.l.b16 %v93
    %v396 = vunpack.c.h.b16 %v93
    %v397 = vunpack.c.l.b16 %v94
    %v398 = vunpack.c.h.b16 %v94
    %v399 = vunpack.c.l.b16 %v95
    %v400 = vunpack.c.h.b16 %v95
    %v401 = vunpack.c.l.b16 %v96
    %v402 = vunpack.c.h.b16 %v96
    %v403 = vunpack.c.l.b16 %v97
    %v404 = vunpack.c.h.b16 %v97
    %v405 = vunpack.c.l.b16 %v98
    %v406 = vunpack.c.h.b16 %v98
    %v407 = vunpack.c.l.b16 %v99
    %v408 = vunpack.c.h.b16 %v99
    %v409 = vunpack.c.l.b16 %v100
    %v410 = vunpack.c.h.b16 %v100
    %v411 = vunpack.c.l.b16 %v101
    %v412 = vunpack.c.h.b16 %v101
    %v413 = vunpack.c.l.b16 %v102
    %v414 = vunpack.c.h.b16 %v102
    %v415 = vunpack.c.l.b16 %v103
    %v416 = vunpack.c.h.b16 %v103
    %v417 = vunpack.c.l.b16 %v104
    %v418 = vunpack.c.h.b16 %v104
    %v419 = vunpack.c.l.b16 %v105
    %v420 = vunpack.c.h.b16 %v105
    %v421 = vunpack.c.l.b16 %v106
    %v422 = vunpack.c.h.b16 %v106
    %v423 = vunpack.c.l.b16 %v107
    %v424 = vunpack.c.h.b16 %v107
    %v425 = vunpack.c.l.b16 %v108
    %v426 = vunpack.c.h.b16 %v108
    %v427 = vunpack.c.l.b16 %v109
    %v428 = vunpack.c.h.b16 %v109
    %v429 = vunpack.c.l.b16 %v110
    %v430 = vunpack.c.h.b16 %v110
    %v431 = vunpack.c.l.b16 %v111
    %v432 = vunpack.c.h.b16 %v111
    %v433 = vunpack.c.l.b16 %v112
    %v434 = vunpack.c.h.b16 %v112
    %v435 = vunpack.c.l.b16 %v113
    %v436 = vunpack.c.h.b16 %v113
    %v437 = vunpack.c.l.b16 %v114
    %v438 = vunpack.c.h.b16 %v114
    %v439 = vunpack.c.l.b16 %v115
    %v440 = vunpack.c.h.b16 %v115
    %v441 = vunpack.c.l.b16 %v116
    %v442 = vunpack.c.h.b16 %v116
    %v443 = vunpack.c.l.b16 %v117
    %v444 = vunpack.c.h.b16 %v117
    %v445 = vunpack.c.l.b16 %v118
    %v446 = vunpack.c.h.b16 %v118
    %v447 = vunpack.c.l.b16 %v119
    %v448 = vunpack.c.h.b16 %v119
    %v449 = vunpack.c.l.b16 %v120
    %v450 = vunpack.c.h.b16 %v120
    %v451 = vunpack.c.l.b16 %v121
    %v452 = vunpack.c.h.b16 %v121
    %v453 = vunpack.c.l.b16 %v122
    %v454 = vunpack.c.h.b16 %v122
    %v455 = vunpack.c.l.b16 %v123
    %v456 = vunpack.c.h.b16 %v123
    %v457 = vunpack.c.l.b16 %v124
    %v458 = vunpack.c.h.b16 %v124
    %v459 = vunpack.c.l.b16 %v125
    %v460 = vunpack.c.h.b16 %v125
    %v461 = vunpack.c.l.b16 %v126
    %v462 = vunpack.c.h.b16 %v126
    %v463 = vunpack.c.l.b16 %v127
    %v464 = vunpack.c.h.b16 %v127
    %v465 = vunpack.c.l.b16 %v128
    %v466 = vunpack.c.h.b16 %v128
    %v467 = vunpack.c.l.b16 %v129
    %v468 = vunpack.c.h.b16 %v129
    %v469 = vunpack.c.l.b16 %v130
    %v470 = vunpack.c.h.b16 %v130
    %v471 = vunpack.c.l.b16 %v131
    %v472 = vunpack.c.h.b16 %v131
    %v473 = vunpack.c.l.b16 %v132
    %v474 = vunpack.c.h.b16 %v132
    %v475 = vunpack.c.l.b16 %v133
    %v476 = vunpack.c.h.b16 %v133
    %v477 = vunpack.c.l.b16 %v134
    %v478 = vunpack.c.h.b16 %v134
    %v479 = vunpack.c.l.b16 %v135
    %v480 = vunpack.c.h.b16 %v135
    %v481 = vunpack.c.l.b16 %v136
    %v482 = vunpack.c.h.b16 %v136
    %v483 = vunpack.c.l.b16 %v137
    %v484 = vunpack.c.h.b16 %v137
    %v485 = vunpack.c.l.b16 %v138
    %v486 = vunpack.c.h.b16 %v138
    %v487 = vunpack.c.l.b16 %v139
    %v488 = vunpack.c.h.b16 %v139
    %v489 = vunpack.c.l.b16 %v140
    %v490 = vunpack.c.h.b16 %v140
    %v491 = vunpack.c.l.b16 %v141
    %v492 = vunpack.c.h.b16 %v141
    %v493 = vunpack.c.l.b16 %v142
    %v494 = vunpack.c.h.b16 %v142
    %v495 = vunpack.c.l.b16 %v143
    %v496 = vunpack.c.h.b16 %v143
    %v497 = vunpack.c.l.b16 %v144
    %v498 = vunpack.c.h.b16 %v144
    %v499 = vunpack.c.l.b16 %v145
    %v500 = vunpack.c.h.b16 %v145
    %v501 = vunpack.c.l.b16 %v146
    %v502 = vunpack.c.h.b16 %v146
    %v503 = vunpack.c.l.b16 %v147
    %v504 = vunpack.c.h.b16 %v147
    %v505 = vunpack.c.l.b16 %v148
    %v506 = vunpack.c.h.b16 %v148
    %v507 = vunpack.c.l.b16 %v149
    %v508 = vunpack.c.h.b16 %v149
    %v509 = vunpack.c.l.b16 %v150
    %v510 = vunpack.c.h.b16 %v150
    %v511 = vunpack.c.l.b16 %v151
    %v512 = vunpack.c.h.b16 %v151
    %v513 = vunpack.c.l.b16 %v152
    %v514 = vunpack.c.h.b16 %v152
    %v515 = vunpack.c.l.b16 %v153
    %v516 = vunpack.c.h.b16 %v153
    %v517 = vunpack.c.l.b16 %v154
    %v518 = vunpack.c.h.b16 %v154
    %v519 = vunpack.c.l.b16 %v155
    %v520 = vunpack.c.h.b16 %v155
    %v521 = vunpack.c.l.b16 %v156
    %v522 = vunpack.c.h.b16 %v156
    %v523 = vunpack.c.l.b16 %v157
    %v524 = vunpack.c.h.b16 %v157
    %v525 = vunpack.c.l.b16 %v158
    %v526 = vunpack.c.h.b16 %v158
    %v527 = vunpack.c.l.b16 %v159
    %v528 = vunpack.c.h.b16 %v159
    %v529 = vunpack.c.l.b16 %v160
    %v530 = vunpack.c.h.b16 %v160
    %v531 = vunpack.c.l.b16 %v161
    %v532 = vunpack.c.h.b16 %v161
    %v533 = vunpack.c.l.b16 %v162
    %v534 = vunpack.c.h.b16 %v162
    %v535 = vunpack.c.l.b16 %v163
    %v536 = vunpack.c.h.b16 %v163
    %v537 = vunpack.c.l.b16 %v164
    %v538 = vunpack.c.h.b16 %v164
    %v539 = vunpack.c.l.b16 %v165
    %v540 = vunpack.c.h.b16 %v165
    %v541 = vunpack.c.l.b16 %v166
    %v542 = vunpack.c.h.b16 %v166
    %v543 = vunpack.c.l.b16 %v167
    %v544 = vunpack.c.h.b16 %v167
    %v545 = vunpack.c.l.b16 %v168
    %v546 = vunpack.c.h.b16 %v168
    %v547 = vunpack.c.l.b16 %v169
    %v548 = vunpack.c.h.b16 %v169
    %v549 = vunpack.c.l.b16 %v170
    %v550 = vunpack.c.h.b16 %v170
    %v551 = vunpack.c.l.b16 %v171
    %v552 = vunpack.c.h.b16 %v171
    %v553 = vunpack.c.l.b16 %v172
    %v554 = vunpack.c.h.b16 %v172
    %v555 = vunpack.c.l.b16 %v173
    %v556 = vunpack.c.h.b16 %v173
    %v557 = vunpack.c.l.b16 %v174
    %v558 = vunpack.c.h.b16 %v174
    %v559 = vunpack.c.l.b16 %v175
    %v560 = vunpack.c.h.b16 %v175
    %v561 = vunpack.c.l.b16 %v176
    %v562 = vunpack.c.h.b16 %v176
    %v563 = vunpack.c.l.b16 %v177
    %v564 = vunpack.c.h.b16 %v177
    %v565 = vunpack.c.l.b16 %v178
    %v566 = vunpack.c.h.b16 %v178
    %v567 = vunpack.c.l.b16 %v179
    %v568 = vunpack.c.h.b16 %v179
    %v569 = vunpack.c.l.b16 %v180
    %v570 = vunpack.c.h.b16 %v180
    %v571 = vunpack.c.l.b16 %v181
    %v572 = vunpack.c.h.b16 %v181
    %v573 = vunpack.c.l.b16 %v182
    %v574 = vunpack.c.h.b16 %v182
    %v575 = vunpack.c.l.b16 %v183
    %v576 = vunpack.c.h.b16 %v183
    %v577 = vunpack.c.l.b16 %v184
    %v578 = vunpack.c.h.b16 %v184
    %v579 = vunpack.c.l.b16 %v185
    %v580 = vunpack.c.h.b16 %v185
    %v581 = vunpack.c.l.b16 %v186
    %v582 = vunpack.c.h.b16 %v186
    %v583 = vunpack.c.l.b16 %v187
    %v584 = vunpack.c.h.b16 %v187
    %v585 = vunpack.c.l.b16 %v188
    %v586 = vunpack.c.h.b16 %v188
    %v587 = vpack.c.b16 %v335, %v331
    %v588 = vpack.c.b16 %v336, %v332
    %v589 = vpack.c.b16 %v337, %v333
    %v590 = vpack.c.b16 %v338, %v334
    %v591 = vpack.c.b16 %v343, %v339
    %v592 = vpack.c.b16 %v344, %v340
    %v593 = vpack.c.b16 %v345, %v341
    %v594 = vpack.c.b16 %v346, %v342
    %v595 = vpack.c.b16 %v351, %v347
    %v596 = vpack.c.b16 %v352, %v348
    %v597 = vpack.c.b16 %v353, %v349
    %v598 = vpack.c.b16 %v354, %v350
    %v599 = vpack.c.b16 %v359, %v355
    %v600 = vpack.c.b16 %v360, %v356
    %v601 = vpack.c.b16 %v361, %v357
    %v602 = vpack.c.b16 %v362, %v358
    %v603 = vpack.c.b16 %v367, %v363
    %v604 = vpack.c.b16 %v368, %v364
    %v605 = vpack.c.b16 %v369, %v365
    %v606 = vpack.c.b16 %v370, %v366
    %v607 = vpack.c.b16 %v375, %v371
    %v608 = vpack.c.b16 %v376, %v372
    %v609 = vpack.c.b16 %v377, %v373
    %v610 = vpack.c.b16 %v378, %v374
    %v611 = vpack.c.b16 %v383, %v379
    %v612 = vpack.c.b16 %v384, %v380
    %v613 = vpack.c.b16 %v385, %v381
    %v614 = vpack.c.b16 %v386, %v382
    %v615 = vpack.c.b16 %v391, %v387
    %v616 = vpack.c.b16 %v392, %v388
    %v617 = vpack.c.b16 %v393, %v389
    %v618 = vpack.c.b16 %v394, %v390
    %v619 = vpack.c.b16 %v399, %v395
    %v620 = vpack.c.b16 %v400, %v396
    %v621 = vpack.c.b16 %v401, %v397
    %v622 = vpack.c.b16 %v402, %v398
    %v623 = vpack.c.b16 %v407, %v403
    %v624 = vpack.c.b16 %v408, %v404
    %v625 = vpack.c.b16 %v409, %v405
    %v626 = vpack.c.b16 %v410, %v406
    %v627 = vpack.c.b16 %v415, %v411
    %v628 = vpack.c.b16 %v416, %v412
    %v629 = vpack.c.b16 %v417, %v413
    %v630 = vpack.c.b16 %v418, %v414
    %v631 = vpack.c.b16 %v423, %v419
    %v632 = vpack.c.b16 %v424, %v420
    %v633 = vpack.c.b16 %v425, %v421
    %v634 = vpack.c.b16 %v426, %v422
    %v635 = vpack.c.b16 %v431, %v427
    %v636 = vpack.c.b16 %v432, %v428
    %v637 = vpack.c.b16 %v433, %v429
    %v638 = vpack.c.b16 %v434, %v430
    %v639 = vpack.c.b16 %v439, %v435
    %v640 = vpack.c.b16 %v440, %v436
    %v641 = vpack.c.b16 %v441, %v437
    %v642 = vpack.c.b16 %v442, %v438
    %v643 = vpack.c.b16 %v447, %v443
    %v644 = vpack.c.b16 %v448, %v444
    %v645 = vpack.c.b16 %v449, %v445
    %v646 = vpack.c.b16 %v450, %v446
    %v647 = vpack.c.b16 %v455, %v451
    %v648 = vpack.c.b16 %v456, %v452
    %v649 = vpack.c.b16 %v457, %v453
    %v650 = vpack.c.b16 %v458, %v454
    %v651 = vpack.c.b16 %v463, %v459
    %v652 = vpack.c.b16 %v464, %v460
    %v653 = vpack.c.b16 %v465, %v461
    %v654 = vpack.c.b16 %v466, %v462
    %v655 = vpack.c.b16 %v471, %v467
    %v656 = vpack.c.b16 %v472, %v468
    %v657 = vpack.c.b16 %v473, %v469
    %v658 = vpack.c.b16 %v474, %v470
    %v659 = vpack.c.b16 %v479, %v475
    %v660 = vpack.c.b16 %v480, %v476
    %v661 = vpack.c.b16 %v481, %v477
    %v662 = vpack.c.b16 %v482, %v478
    %v663 = vpack.c.b16 %v487, %v483
    %v664 = vpack.c.b16 %v488, %v484
    %v665 = vpack.c.b16 %v489, %v485
    %v666 = vpack.c.b16 %v490, %v486
    %v667 = vpack.c.b16 %v495, %v491
    %v668 = vpack.c.b16 %v496, %v492
    %v669 = vpack.c.b16 %v497, %v493
    %v670 = vpack.c.b16 %v498, %v494
    %v671 = vpack.c.b16 %v503, %v499
    %v672 = vpack.c.b16 %v504, %v500
    %v673 = vpack.c.b16 %v505, %v501
    %v674 = vpack.c.b16 %v506, %v502
    %v675 = vpack.c.b16 %v511, %v507
    %v676 = vpack.c.b16 %v512, %v508
    %v677 = vpack.c.b16 %v513, %v509
    %v678 = vpack.c.b16 %v514, %v510
    %v679 = vpack.c.b16 %v519, %v515
    %v680 = vpack.c.b16 %v520, %v516
    %v681 = vpack.c.b16 %v521, %v517
    %v682 = vpack.c.b16 %v522, %v518
    %v683 = vpack.c.b16 %v527, %v523
    %v684 = vpack.c.b16 %v528, %v524
    %v685 = vpack.c.b16 %v529, %v525
    %v686 = vpack.c.b16 %v530, %v526
    %v687 = vpack.c.b16 %v535, %v531
    %v688 = vpack.c.b16 %v536, %v532
    %v689 = vpack.c.b16 %v537, %v533
    %v690 = vpack.c.b16 %v538, %v534
    %v691 = vpack.c.b16 %v543, %v539
    %v692 = vpack.c.b16 %v544, %v540
    %v693 = vpack.c.b16 %v545, %v541
    %v694 = vpack.c.b16 %v546, %v542
    %v695 = vpack.c.b16 %v551, %v547
    %v696 = vpack.c.b16 %v552, %v548
    %v697 = vpack.c.b16 %v553, %v549
    %v698 = vpack.c.b16 %v554, %v550
    %v699 = vpack.c.b16 %v559, %v555
    %v700 = vpack.c.b16 %v560, %v556
    %v701 = vpack.c.b16 %v561, %v557
    %v702 = vpack.c.b16 %v562, %v558
    %v703 = vpack.c.b16 %v567, %v563
    %v704 = vpack.c.b16 %v568, %v564
    %v705 = vpack.c.b16 %v569, %v565
    %v706 = vpack.c.b16 %v570, %v566
    %v707 = vpack.c.b16 %v575, %v571
    %v708 = vpack.c.b16 %v576, %v572
    %v709 = vpack.c.b16 %v577, %v573
    %v710 = vpack.c.b16 %v578, %v574
    %v711 = vpack.c.b16 %v583, %v579
    %v712 = vpack.c.b16 %v584, %v580
    %v713 = vpack.c.b16 %v585, %v581
    %v714 = vpack.c.b16 %v586, %v582
    %843 = vmatprep.subr.bf16.mxu0 %v588
    %844 = vmatpush1.bf16.msra.mxu0 %v587
    %845 = vmatprep.subr.bf16.mxu0 %v592
    %846 = vmatpush1.bf16.msra.mxu0 %v591
    %847 = vmatprep.subr.bf16.mxu0 %v596
    %848 = vmatpush1.bf16.msra.mxu0 %v595
    %849 = vmatprep.subr.bf16.mxu0 %v600
    %850 = vmatpush1.bf16.msra.mxu0 %v599
    %851 = vmatprep.subr.bf16.mxu0 %v604
    %852 = vmatpush1.bf16.msra.mxu0 %v603
    %853 = vmatprep.subr.bf16.mxu0 %v608
    %854 = vmatpush1.bf16.msra.mxu0 %v607
    %855 = vmatprep.subr.bf16.mxu0 %v612
    %856 = vmatpush1.bf16.msra.mxu0 %v611
    %857 = vmatprep.subr.bf16.mxu0 %v616
    %858 = vmatpush1.bf16.msra.mxu0 %v615
    %859 = vmatprep.subr.bf16.mxu0 %v620
    %860 = vmatpush1.bf16.msra.mxu0 %v619
    %861 = vmatprep.subr.bf16.mxu0 %v624
    %862 = vmatpush1.bf16.msra.mxu0 %v623
    %863 = vmatprep.subr.bf16.mxu0 %v628
    %864 = vmatpush1.bf16.msra.mxu0 %v627
    %865 = vmatprep.subr.bf16.mxu0 %v632
    %866 = vmatpush1.bf16.msra.mxu0 %v631
    %867 = vmatprep.subr.bf16.mxu0 %v636
    %868 = vmatpush1.bf16.msra.mxu0 %v635
    %869 = vmatprep.subr.bf16.mxu0 %v640
    %870 = vmatpush1.bf16.msra.mxu0 %v639
    %871 = vmatprep.subr.bf16.mxu0 %v644
    %872 = vmatpush1.bf16.msra.mxu0 %v643
    %873 = vmatprep.subr.bf16.mxu0 %v648
    %874 = vmatpush1.bf16.msra.mxu0 %v647
    %875 = vmatprep.mubr.bf16.mxu0 %v196
    %876 = vmatmul.mubr.bf16.gmra.mrb[0].mxu0 %v195
    %v877 = vpop.f32.mrb[0].mxu0
    %v878 = vadd.f32 0.0, %v877
    %v879 = vpop.f32.mrb[0].mxu0
    %v880 = vadd.f32 0.0, %v879
    %v881 = vpop.f32.mrb[0].mxu0
    %v882 = vpop.f32.mrb[0].mxu0
    %883 = vdwg.mxu0
    %884 = vmatprep.subr.bf16.mxu0 %v652
    %885 = vmatpush1.bf16.msra.mxu0 %v651
    %886 = vmatprep.subr.bf16.mxu0 %v656
    %887 = vmatpush1.bf16.msra.mxu0 %v655
    %888 = vmatprep.subr.bf16.mxu0 %v660
    %889 = vmatpush1.bf16.msra.mxu0 %v659
    %890 = vmatprep.subr.bf16.mxu0 %v664
    %891 = vmatpush1.bf16.msra.mxu0 %v663
    %892 = vmatprep.subr.bf16.mxu0 %v668
    %893 = vmatpush1.bf16.msra.mxu0 %v667
    %894 = vmatprep.subr.bf16.mxu0 %v672
    %895 = vmatpush1.bf16.msra.mxu0 %v671
    %896 = vmatprep.subr.bf16.mxu0 %v676
    %897 = vmatpush1.bf16.msra.mxu0 %v675
    %898 = vmatprep.subr.bf16.mxu0 %v680
    %899 = vmatpush1.bf16.msra.mxu0 %v679
    %900 = vmatprep.subr.bf16.mxu0 %v684
    %901 = vmatpush1.bf16.msra.mxu0 %v683
    %902 = vmatprep.subr.bf16.mxu0 %v688
    %903 = vmatpush1.bf16.msra.mxu0 %v687
    %904 = vmatprep.subr.bf16.mxu0 %v692
    %905 = vmatpush1.bf16.msra.mxu0 %v691
    %906 = vmatprep.subr.bf16.mxu0 %v696
    %907 = vmatpush1.bf16.msra.mxu0 %v695
    %908 = vmatprep.subr.bf16.mxu0 %v700
    %909 = vmatpush1.bf16.msra.mxu0 %v699
    %910 = vmatprep.subr.bf16.mxu0 %v704
    %911 = vmatpush1.bf16.msra.mxu0 %v703
    %912 = vmatprep.subr.bf16.mxu0 %v708
    %913 = vmatpush1.bf16.msra.mxu0 %v707
    %914 = vmatprep.subr.bf16.mxu0 %v712
    %915 = vmatpush1.bf16.msra.mxu0 %v711
    %916 = vmatprep.mubr.bf16.mxu0 %v198
    %917 = vmatmul.mubr.bf16.gmra.mrb[0].mxu0 %v197
    %v918 = vpop.f32.mrb[0].mxu0
    %v919 = vadd.f32 %v878, %v918
    %v920 = vpop.f32.mrb[0].mxu0
    %v921 = vadd.f32 %v880, %v920
    %v922 = vpop.f32.mrb[0].mxu0
    %v923 = vpop.f32.mrb[0].mxu0
    %924 = vdwg.mxu0
    %925 = vmatprep.subr.bf16.mxu0 %v590
    %926 = vmatpush1.bf16.msra.mxu0 %v589
    %927 = vmatprep.subr.bf16.mxu0 %v594
    %928 = vmatpush1.bf16.msra.mxu0 %v593
    %929 = vmatprep.subr.bf16.mxu0 %v598
    %930 = vmatpush1.bf16.msra.mxu0 %v597
    %931 = vmatprep.subr.bf16.mxu0 %v602
    %932 = vmatpush1.bf16.msra.mxu0 %v601
    %933 = vmatprep.subr.bf16.mxu0 %v606
    %934 = vmatpush1.bf16.msra.mxu0 %v605
    %935 = vmatprep.subr.bf16.mxu0 %v610
    %936 = vmatpush1.bf16.msra.mxu0 %v609
    %937 = vmatprep.subr.bf16.mxu0 %v614
    %938 = vmatpush1.bf16.msra.mxu0 %v613
    %939 = vmatprep.subr.bf16.mxu0 %v618
    %940 = vmatpush1.bf16.msra.mxu0 %v617
    %941 = vmatprep.subr.bf16.mxu0 %v622
    %942 = vmatpush1.bf16.msra.mxu0 %v621
    %943 = vmatprep.subr.bf16.mxu0 %v626
    %944 = vmatpush1.bf16.msra.mxu0 %v625
    %945 = vmatprep.subr.bf16.mxu0 %v630
    %946 = vmatpush1.bf16.msra.mxu0 %v629
    %947 = vmatprep.subr.bf16.mxu0 %v634
    %948 = vmatpush1.bf16.msra.mxu0 %v633
    %949 = vmatprep.subr.bf16.mxu0 %v638
    %950 = vmatpush1.bf16.msra.mxu0 %v637
    %951 = vmatprep.subr.bf16.mxu0 %v642
    %952 = vmatpush1.bf16.msra.mxu0 %v641
    %953 = vmatprep.subr.bf16.mxu0 %v646
    %954 = vmatpush1.bf16.msra.mxu0 %v645
    %955 = vmatprep.subr.bf16.mxu0 %v650
    %956 = vmatpush1.bf16.msra.mxu0 %v649
    %957 = vmatprep.mubr.bf16.mxu0 %v196
    %958 = vmatmul.mubr.bf16.gmra.mrb[0].mxu0 %v195
    %v959 = vpop.f32.mrb[0].mxu0
    %v960 = vadd.f32 0.0, %v959
    %v961 = vpop.f32.mrb[0].mxu0
    %v962 = vadd.f32 0.0, %v961
    %v963 = vpop.f32.mrb[0].mxu0
    %v964 = vpop.f32.mrb[0].mxu0
    %965 = vdwg.mxu0
    %966 = vmatprep.subr.bf16.mxu0 %v654
    %967 = vmatpush1.bf16.msra.mxu0 %v653
    %968 = vmatprep.subr.bf16.mxu0 %v658
    %969 = vmatpush1.bf16.msra.mxu0 %v657
    %970 = vmatprep.subr.bf16.mxu0 %v662
    %971 = vmatpush1.bf16.msra.mxu0 %v661
    %972 = vmatprep.subr.bf16.mxu0 %v666
    %973 = vmatpush1.bf16.msra.mxu0 %v665
    %974 = vmatprep.subr.bf16.mxu0 %v670
    %975 = vmatpush1.bf16.msra.mxu0 %v669
    %976 = vmatprep.subr.bf16.mxu0 %v674
    %977 = vmatpush1.bf16.msra.mxu0 %v673
    %978 = vmatprep.subr.bf16.mxu0 %v678
    %979 = vmatpush1.bf16.msra.mxu0 %v677
    %980 = vmatprep.subr.bf16.mxu0 %v682
    %981 = vmatpush1.bf16.msra.mxu0 %v681
    %982 = vmatprep.subr.bf16.mxu0 %v686
    %983 = vmatpush1.bf16.msra.mxu0 %v685
    %984 = vmatprep.subr.bf16.mxu0 %v690
    %985 = vmatpush1.bf16.msra.mxu0 %v689
    %986 = vmatprep.subr.bf16.mxu0 %v694
    %987 = vmatpush1.bf16.msra.mxu0 %v693
    %988 = vmatprep.subr.bf16.mxu0 %v698
    %989 = vmatpush1.bf16.msra.mxu0 %v697
    %990 = vmatprep.subr.bf16.mxu0 %v702
    %991 = vmatpush1.bf16.msra.mxu0 %v701
    %992 = vmatprep.subr.bf16.mxu0 %v706
    %993 = vmatpush1.bf16.msra.mxu0 %v705
    %994 = vmatprep.subr.bf16.mxu0 %v710
    %995 = vmatpush1.bf16.msra.mxu0 %v709
    %996 = vmatprep.subr.bf16.mxu0 %v714
    %997 = vmatpush1.bf16.msra.mxu0 %v713
    %998 = vmatprep.mubr.bf16.mxu0 %v198
    %999 = vmatmul.mubr.bf16.gmra.mrb[0].mxu0 %v197
    %v1000 = vpop.f32.mrb[0].mxu0
    %v1001 = vadd.f32 %v960, %v1000
    %v1002 = vpop.f32.mrb[0].mxu0
    %v1003 = vadd.f32 %v962, %v1002
    %v1004 = vpop.f32.mrb[0].mxu0
    %v1005 = vpop.f32.mrb[0].mxu0
    %1006 = vdwg.mxu0
    %v1007 = vadd.f32 %v55, %v919
    %v1008 = vadd.f32 %v56, %v921
    %v1009 = vadd.f32 %v57, %v1001
    %v1010 = vadd.f32 %v58, %v1003
    %1011 = vst [vmem:[#allocation2] sm:$0xff] %v1007
    %1012 = vst [vmem:[#allocation2 + $0x8] sm:$0xff] %v1008
    %1013 = vst [vmem:[#allocation2 + $0x10] sm:$0xff] %v1009
    %1014 = vst [vmem:[#allocation2 + $0x18] sm:$0xff] %v1010
    // Predicated region
    $region34: #{tpu_custom_call.1} parent=1 // pred_check
      %p1015 = pneg %p47
    $region35: #{tpu_custom_call.1} parent=1 // pred_check_branch
      %1017 = sbr.rel (%p1015) target = $region37
    $region36: #{tpu_custom_call.1} parent=1 // pred_region
      %v1018 = vld [vmem:[#allocation2] sm:$0xff]
      %v1019 = vld [vmem:[#allocation2 + $0x8] sm:$0xff]
      %v1020 = vld [vmem:[#allocation2 + $0x10] sm:$0xff]
      %v1021 = vld [vmem:[#allocation2 + $0x18] sm:$0xff]
      %v1022 = vld [vmem:[%s2] sm:$0xf]
      %v1024 = vlaneseq
      %v1025 = vshrl.u32 %v1024, 7
      %v1026 = vsub.s32 0, %v1025
      %v1027 = vrot.slane %v1022, %v1026
      %v1028 = vlaneseq
      %v1029 = vshrl.u32 %v1028, 7
      %v1030 = vsub.s32 1, %v1029
      %v1031 = vrot.slane %v1022, %v1030
      %v1032 = vlaneseq
      %v1033 = vshrl.u32 %v1032, 7
      %v1034 = vsub.s32 2, %v1033
      %v1035 = vrot.slane %v1022, %v1034
      %v1036 = vlaneseq
      %v1037 = vshrl.u32 %v1036, 7
      %v1038 = vsub.s32 3, %v1037
      %v1039 = vrot.slane %v1022, %v1038
      %v1044 = vadd.f32 %v1018, %v1027
      %v1045 = vadd.f32 %v1019, %v1031
      %v1046 = vadd.f32 %v1020, %v1035
      %v1047 = vadd.f32 %v1021, %v1039
      %vm1048 = vcmp.ge.f32.partialorder %v1044, 0.0
      %vm1049 = vcmp.ge.f32.partialorder %v1045, 0.0
      %vm1050 = vcmp.ge.f32.partialorder %v1046, 0.0
      %vm1051 = vcmp.ge.f32.partialorder %v1047, 0.0
      %v1052 = vmul.f32 %v1044, 0.2
      %v1053 = vmul.f32 %v1045, 0.2
      %v1054 = vmul.f32 %v1046, 0.2
      %v1055 = vmul.f32 %v1047, 0.2
      %v1056 = vsel %vm1048, %v1044, %v1052
      %v1057 = vsel %vm1049, %v1045, %v1053
      %v1058 = vsel %vm1050, %v1046, %v1054
      %v1059 = vsel %vm1051, %v1047, %v1055
      %v1060 = vld [vmem:[%s3] sm:$0xf]
      %v1062 = vlaneseq
      %v1063 = vshrl.u32 %v1062, 7
      %v1064 = vsub.s32 0, %v1063
      %v1065 = vrot.slane %v1060, %v1064
      %v1066 = vlaneseq
      %v1067 = vshrl.u32 %v1066, 7
      %v1068 = vsub.s32 1, %v1067
      %v1069 = vrot.slane %v1060, %v1068
      %v1070 = vlaneseq
      %v1071 = vshrl.u32 %v1070, 7
      %v1072 = vsub.s32 2, %v1071
      %v1073 = vrot.slane %v1060, %v1072
      %v1074 = vlaneseq
      %v1075 = vshrl.u32 %v1074, 7
      %v1076 = vsub.s32 3, %v1075
      %v1077 = vrot.slane %v1060, %v1076
      %v1082 = vmul.f32 %v1056, %v1065
      %v1083 = vmul.f32 %v1057, %v1069
      %v1084 = vmul.f32 %v1058, %v1073
      %v1085 = vmul.f32 %v1059, %v1077
      %v1086 = vadd.f32 %v1082, %v1083
      %v1087 = vadd.f32 %v1086, %v1084
      %v1088 = vadd.f32 %v1087, %v1085
      %1089 = vadd.xlane.f32.xlu0 %v1088
      %v1090 = vpop.xlane.xlu0 %1089
      %s1091 = sld [smem:[#allocation3]]
      %v1092 = vstv %s1091
      %v1093 = vadd.f32 %v1090, %v1092
      %v1094 = vsub.f32 0.0, %v1093
      %v1095 = vmul.f32 %v1094, 1.442695
      %v1096 = vpow.pop %v1095
      %v1097 = vadd.f32 %v1096, 1.0
      %v1098 = vrcp.pop %v1097
      %v1099 = vmul.f32 1.0, %v1098
      %vm1100 = vcmask 7168
      %1101 = vst.msk [vmem:[%s5] sm:$0xff] %vm1100, %v1099
    $region37: #{tpu_custom_call.1} parent=1 // pred_fallthru
      _
    // Predicated region
    $region38: #{tpu_custom_call.1} parent=1 // pred_check
      _
    $region39: #{tpu_custom_call.1} parent=1 // pred_check_branch
      %1103 = sbr.rel (0) target = $region41
    $region40: #{tpu_custom_call.1} parent=1 // pred_region
      _
    $region41: #{tpu_custom_call.1} parent=1 // pred_fallthru
      _
    // Predicated region
    $region42: #{tpu_custom_call.1} parent=1 // pred_check
      _
    $region43: #{tpu_custom_call.1} parent=1 // pred_check_branch
      %1105 = sbr.rel (0) target = $region45
    $region44: #{tpu_custom_call.1} parent=1 // pred_region
      _
    $region45: #{tpu_custom_call.1} parent=1 // pred_fallthru
      _
    %1106 = vsyncpa [#allocation5], 1
    %1107 = vsyncpa [#allocation7], 1

</llo_original>
